<compile_context>
chip_gen: v6e
topology: v6e:2x2x1
jax: 0.10.0
libtpu: 0.0.40
codegen_flags: <defaults>
</compile_context>

<pallas_src>
import jax
import jax.numpy as jnp
from jax.experimental import pallas as pl
from jax.experimental.pallas import tpu as pltpu


# ----------------------------- Pallas kernel --------------------------------
def _nand_conv_kernel(p_ref, m_ref, o_ref):
    """One M-tile of:  out = 1 - 0.5 * (P@Ma + 1) * (P@Mb + 1).

    p_ref : (TM, K)      bf16 im2col patches of the *sign-domain* input
                         (values +-1; spatial conv padding is -1)
    m_ref : (K, 2*OCP)   bf16 fused one-hot masks: [:, :OCP] = A^T, [:, OCP:] = B^T
                         (columns beyond OC are all-zero lane padding)
    o_ref : (TM, OCP)    bf16 NAND output in sign domain (+-1 in the first OC lanes)

    Because each real mask column is one-hot, P_sign @ M = 2*(P_bin @ M) - 1,
    i.e. the dot directly yields the selector output in sign domain.
    """
    ocp = o_ref.shape[-1]
    y = jnp.dot(p_ref[...], m_ref[...], preferred_element_type=jnp.float32)
    a = y[:, :ocp]                         # = 2*a_bin - 1   (0 in padded lanes)
    b = y[:, ocp:]                         # = 2*b_bin - 1
    # 1 - 2*a_bin*b_bin  ==  1 - 0.5*(a+1)*(b+1)
    o_ref[...] = (1.0 - 0.5 * (a + 1.0) * (b + 1.0)).astype(o_ref.dtype)


# ------------------------------- JAX glue ------------------------------------
def _round_up(x, m):
    return ((x + m - 1) // m) * m


def _xavier_uniform(key, shape):
    o, c, kh, kw = shape
    fan_in = c * kh * kw
    fan_out = o * kh * kw
    bound = (6.0 / (fan_in + fan_out)) ** 0.5
    return jax.random.uniform(key, shape, jnp.float32, -bound, bound)


def _sample_one_hot_mask(weight, key, temperature=1.0):
    """weighted_random(): multinomial(softmax(w.view(O,-1)/T)) -> one-hot rows."""
    o = weight.shape[0]
    selector = weight.reshape(o, -1)                       # (O, C*k*k)
    idx = jax.random.categorical(key, selector / temperature, axis=-1)
    return jax.nn.one_hot(idx, selector.shape[1], dtype=jnp.float32)  # (O, C*k*k)


def _im2col(x, k, stride, pad, pad_value):
    """x: (N, C, H, W) -> patches (N*OH*OW, C*k*k); feature order c-major then
    (kh, kw), matching PyTorch weight.view(O, -1)."""
    n, c, h, w = x.shape
    xp = jnp.pad(x, ((0, 0), (0, 0), (pad, pad), (pad, pad)),
                 constant_values=pad_value)
    oh = (h + 2 * pad - k) // stride + 1
    ow = (w + 2 * pad - k) // stride + 1
    cols = []
    for kh in range(k):
        for kw in range(k):
            cols.append(xp[:, :, kh:kh + stride * oh:stride, kw:kw + stride * ow:stride])
    cols = jnp.stack(cols, axis=2)                  # (N, C, k*k, OH, OW)
    cols = cols.reshape(n, c * k * k, oh, ow)       # feature index = c*k*k + kh*k + kw
    patches = cols.transpose(0, 2, 3, 1).reshape(n * oh * ow, c * k * k)
    return patches, oh, ow


def _pick_tm(m, tm_max):
    """Largest sane M tile: multiple of 8, <= tm_max, and keep >= 2 grid steps
    when there is enough work so the 'parallel' axis can shard across v7x's
    two TensorCores."""
    tm = min(tm_max, _round_up(m, 8))
    tm = max(8, _round_up(tm, 8))
    if pl.cdiv(m, tm) < 2 and m > 16:
        tm = max(8, _round_up(pl.cdiv(m, 2), 8))
    return tm


def conv2d_nand_forward(x, w_a, w_b, key, *, stride=1, padding=0,
                        temperature=1.0, tm=1024):
    """Forward pass of Conv2d_Nand. x: (N, C, H, W) with values in {-1,+1}.
    Returns NCHW bf16 (values are exactly +-1)."""
    n, c, h, w = x.shape
    oc, cw, k, _ = w_a.shape
    assert cw == c  # TODO(synk): groups > 1 (grouped conv) not implemented here

    # --- sample the two one-hot selector masks (forward value of the ST trick)
    key_a, key_b = jax.random.split(key)
    mask_a = _sample_one_hot_mask(w_a, key_a, temperature)    # (OC, C*k*k)
    mask_b = _sample_one_hot_mask(w_b, key_b, temperature)

    kd = c * k * k
    ocp = _round_up(oc, 128)                                  # lane-dense output
    rhs = jnp.zeros((kd, 2 * ocp), jnp.bfloat16)              # fused [A^T | B^T]
    rhs = rhs.at[:, :oc].set(mask_a.T.astype(jnp.bfloat16))
    rhs = rhs.at[:, ocp:ocp + oc].set(mask_b.T.astype(jnp.bfloat16))

    # --- im2col the raw sign-domain input (bf16 is exact for +-1).
    # Conv zero-padding happens in the *bin* domain, i.e. pad the sign input with -1.
    patches, oh, ow = _im2col(x.astype(jnp.bfloat16), k, stride, padding, -1.0)
    m = patches.shape[0]

    tm_eff = _pick_tm(m, tm)
    grid = (pl.cdiv(m, tm_eff),)          # ragged last tile handled by Pallas

    out = pl.pallas_call(
        _nand_conv_kernel,
        out_shape=jax.ShapeDtypeStruct((m, ocp), jnp.bfloat16),
        grid=grid,
        in_specs=[
            pl.BlockSpec((tm_eff, kd), lambda i: (i, 0)),      # patches tile (streamed)
            pl.BlockSpec((kd, 2 * ocp), lambda i: (0, 0)),     # fused masks (resident)
        ],
        out_specs=pl.BlockSpec((tm_eff, ocp), lambda i: (i, 0)),
        compiler_params=pltpu.CompilerParams(
            dimension_semantics=("parallel",),
            # Tiles are ~1 MiB total; keep the limit well under v7x's 64 MiB.
            vmem_limit_bytes=32 * 1024 * 1024,
        ),
    )(patches, rhs)

    # Drop lane padding and go back to NCHW (module convention). +-1 is exact
    # in bf16, so the output stays bf16 to halve writeback.
    out = out[:, :oc].reshape(n, oh, ow, oc).transpose(0, 3, 1, 2)
    return out


# ------------------------------ reference ------------------------------------
def _reference_forward(x, w_a, w_b, key, *, stride=1, padding=0, temperature=1.0):
    x = x.astype(jnp.float32)
    oc, c, k, _ = w_a.shape
    x_bin = (x + 1.0) * 0.5
    key_a, key_b = jax.random.split(key)
    mask_a = _sample_one_hot_mask(w_a, key_a, temperature).reshape(oc, c, k, k)
    mask_b = _sample_one_hot_mask(w_b, key_b, temperature).reshape(oc, c, k, k)
    dn = jax.lax.conv_dimension_numbers(x.shape, mask_a.shape, ("NCHW", "OIHW", "NCHW"))
    conv = lambda mm: jax.lax.conv_general_dilated(
        x_bin, mm, (stride, stride), ((padding, padding), (padding, padding)),
        dimension_numbers=dn)
    ya, yb = conv(mask_a), conv(mask_b)
    return 1.0 - 2.0 * ya * yb


# --------------------------------- main ---------------------------------------
if __name__ == "__main__":
    key = jax.random.PRNGKey(0)
    k_x, k_wa, k_wb, k_sample = jax.random.split(key, 4)

    N, C, H, W = 2, 4, 16, 16
    OC, K, STRIDE, PAD = 8, 3, 1, 1

    # input in {-1, +1} (sign domain, as the module expects)
    x = jnp.where(jax.random.bernoulli(k_x, 0.5, (N, C, H, W)), 1.0, -1.0)

    # deterministic xavier-uniform conv weights for the two selectors
    w_a = _xavier_uniform(k_wa, (OC, C, K, K))
    w_b = _xavier_uniform(k_wb, (OC, C, K, K))

    out = conv2d_nand_forward(x, w_a, w_b, k_sample, stride=STRIDE, padding=PAD)
    out = jax.block_until_ready(out)

    ref = _reference_forward(x, w_a, w_b, k_sample, stride=STRIDE, padding=PAD)

    assert out.shape == (N, OC, H, W), out.shape
    out_f32 = out.astype(jnp.float32)
    assert bool(jnp.all((out_f32 == 1.0) | (out_f32 == -1.0))), "output is not in {-1,+1}"
    assert bool(jnp.all(out_f32 == ref)), "mismatch vs. pure-JAX reference"

    print("KERNEL_OK")
</pallas_src>

<mosaic_0001>
module attributes {stable_mosaic.version = 11 : i64} {
  func.func @_nand_conv_kernel(%arg0: i32, %arg1: memref<256x36xbf16, #tpu.memory_space<vmem>>, %arg2: memref<36x256xbf16, #tpu.memory_space<vmem>>, %arg3: memref<256x128xbf16, #tpu.memory_space<vmem>>) attributes {dimension_semantics = [#tpu.dimension_semantics<parallel>], iteration_bounds = array<i64: 2>, scalar_prefetch = 0 : i64, scratch_operands = 0 : i64, tpu.core_type = #tpu.core_type<tc>, window_params = [{transform_indices = @transform_0, window_bounds = array<i64: 256, 36>}, {pipeline_mode = #tpu.pipeline_mode<synchronous>, transform_indices = @transform_1, window_bounds = array<i64: 36, 256>}, {transform_indices = @transform_2, window_bounds = array<i64: 256, 128>}]} {
    %c0 = arith.constant 0 : index
    %c0_0 = arith.constant 0 : index
    %0 = vector.load %arg1[%c0, %c0_0] : memref<256x36xbf16, #tpu.memory_space<vmem>>, vector<256x36xbf16>
    %c0_1 = arith.constant 0 : index
    %c0_2 = arith.constant 0 : index
    %1 = vector.load %arg2[%c0_1, %c0_2] : memref<36x256xbf16, #tpu.memory_space<vmem>>, vector<36x256xbf16>
    %cst = arith.constant dense<0.000000e+00> : vector<256x256xf32>
    %2 = tpu.matmul %0, %1, %cst {dimension_numbers = #tpu.dot_dimension_numbers<[1], [0], [0], [1], [0, 0, 1, 1], [], []>} : vector<256x36xbf16>, vector<36x256xbf16>, vector<256x256xf32> -> vector<256x256xf32>
    %3 = vector.extract_strided_slice %2 {offsets = [0, 0], sizes = [256, 128], strides = [1, 1]} : vector<256x256xf32> to vector<256x128xf32>
    %4 = vector.extract_strided_slice %2 {offsets = [0, 128], sizes = [256, 128], strides = [1, 1]} : vector<256x256xf32> to vector<256x128xf32>
    %cst_3 = arith.constant 1.000000e+00 : f32
    %5 = vector.broadcast %cst_3 : f32 to vector<256x128xf32>
    %6 = arith.addf %3, %5 : vector<256x128xf32>
    %cst_4 = arith.constant 5.000000e-01 : f32
    %7 = vector.broadcast %cst_4 : f32 to vector<256x128xf32>
    %8 = arith.mulf %7, %6 : vector<256x128xf32>
    %cst_5 = arith.constant 1.000000e+00 : f32
    %9 = vector.broadcast %cst_5 : f32 to vector<256x128xf32>
    %10 = arith.addf %4, %9 : vector<256x128xf32>
    %11 = arith.mulf %8, %10 : vector<256x128xf32>
    %cst_6 = arith.constant 1.000000e+00 : f32
    %12 = vector.broadcast %cst_6 : f32 to vector<256x128xf32>
    %13 = arith.subf %12, %11 : vector<256x128xf32>
    %14 = arith.truncf %13 : vector<256x128xf32> to vector<256x128xbf16>
    %c0_7 = arith.constant 0 : index
    %c0_8 = arith.constant 0 : index
    %15 = vector.load %arg3[%c0_7, %c0_8] : memref<256x128xbf16, #tpu.memory_space<vmem>>, vector<256x128xbf16>
    tpu.vector_store %arg3[%c0_7, %c0_8], %14 {strides = array<i32>} : memref<256x128xbf16, #tpu.memory_space<vmem>>, vector<256x128xbf16>,
    return
  }
  func.func @transform_0(%arg0: i32) -> (i32, i32) {
    %c0_i32 = arith.constant 0 : i32
    %c0_i32_0 = arith.constant 0 : i32
    return %arg0, %c0_i32 : i32, i32
  }
  func.func @transform_1(%arg0: i32) -> (i32, i32) {
    %c0_i32 = arith.constant 0 : i32
    %c0_i32_0 = arith.constant 0 : i32
    %c0_i32_1 = arith.constant 0 : i32
    return %c0_i32, %c0_i32_0 : i32, i32
  }
  func.func @transform_2(%arg0: i32) -> (i32, i32) {
    %c0_i32 = arith.constant 0 : i32
    %c0_i32_0 = arith.constant 0 : i32
    return %arg0, %c0_i32 : i32, i32
  }
}

</mosaic_0001>

<llo_original>
// kernel: tpu_custom_call.1
$region0: #{tpu_custom_call.1}
  #allocation0 [shape = 'u32[]', space=smem, size = 0x4, offset = 0x4, fixed_abs, tag = 'smem constant byte address 0x4 - core index']
  #allocation1 [shape = 'u32[144,128]{1,0:T(1,128)}', space=vmem, size = 0x12000, scoped, tag = 'internal scratch']
  %s0 = inlined_call_operand.vmem [shape: bf16[512,36], index: 0, kind: input, shape index: {}]
  %s1 = inlined_call_operand.vmem [shape: bf16[36,256], index: 1, kind: input, shape index: {}]
  %s2 = inlined_call_operand.hbm [shape: bf16[512,128], index: 2, kind: output, shape index: {}]
  %s3 = sld [smem:[#allocation0]]
  $region41: #{tpu_custom_call.1} parent=0
    _
  %s5 = ssub.s32 1, %s3
  %s6 = scalar_select 0, %s5, %s3
  $region1: #{tpu_custom_call.1} parent=0
    #allocation2 [shape = 'u8[131072]{0}', space=vmem, size = 0x20000, scoped, tag = 'output window, operand 0']
    #allocation3 [shape = 's32[2]{0}', space=sflag, size = 0x8, scoped, tag = 'scoped memory for tpu_custom_call.1']
    %7 = vsyncpa [#allocation3], 0
    %s8 = scalar_lea.sflag [#allocation3], 1
    %9 = vsyncpa %s8, 0
    loop: start=0, step=1, limit=4
    $region2: #{tpu_custom_call.1} parent=1 // loop_pre_header
      _
    $region3: #{tpu_custom_call.1} parent=1 // loop_header
      %s11 = sphi 0, %s15
      %p12 = scmp.ge.s32.totalorder %s11, 4
      %s21 = sphi 0, %s23
      %s24 = sphi 0, %s21
      %s25 = sphi 0, %s24
      %s41 = sphi 0, %s25
      %s45 = sphi 0, %s45
      %s47 = sphi 0, %s45
      %s48 = sphi 0, %s47
      %s62 = sphi 0, %s48
      %s68 = sphi 0, %s70
      %s71 = sphi 0, %s68
      %s72 = sphi 0, %s71
      %s88 = sphi 0, %s72
    $region4: #{tpu_custom_call.1} parent=1 // loop_header_branch
      %14 = sbr.rel (%p12) target = $region8
    $region5: #{tpu_custom_call.1} parent=1 // loop_body
      %s16 = ssub.s32 %s11, 1
      %s17 = ssub.s32 %s11, 2
      %s18 = sadd.s32 %s11, 1
      %s19 = ssub.s32 %s11, %s18
      %p20 = scmp.eq.s32.totalorder %s19, 0
      %s22 = sadd.s32 %s21, 1
      %s23 = scalar_select %p20, %s21, %s22
      %p26 = pneg %p20
      %p27 = scmp.eq.s32.totalorder %s11, 1
      %p28 = por %p26, %p27
      %p29 = scmp.ne.s32.totalorder %s21, %s24
      %p30 = scmp.eq.s32.totalorder %s11, 0
      %p31 = por %p29, %p30
      %p32 = scmp.ne.s32.totalorder %s21, %s24
      %p33 = scmp.eq.s32.totalorder %s16, 1
      %p34 = por %p32, %p33
      %p35 = scmp.ne.s32.totalorder %s24, %s25
      %p36 = scmp.eq.s32.totalorder %s16, 0
      %p37 = por %p35, %p36
      %p38 = scmp.ne.s32.totalorder %s24, %s25
      %p39 = scmp.eq.s32.totalorder %s17, 1
      %p40 = por %p38, %p39
      %p42 = scmp.ne.s32.totalorder %s25, %s41
      %p43 = scmp.eq.s32.totalorder %s17, 0
      %p44 = por %p42, %p43
      %s46 = sadd.s32 %s45, 1
      %p49 = scmp.eq.s32.totalorder %s11, 1
      %p50 = scmp.ne.s32.totalorder %s45, %s47
      %p51 = scmp.eq.s32.totalorder %s11, 0
      %p52 = por %p50, %p51
      %p53 = scmp.ne.s32.totalorder %s45, %s47
      %p54 = scmp.eq.s32.totalorder %s16, 1
      %p55 = por %p53, %p54
      %p56 = scmp.ne.s32.totalorder %s47, %s48
      %p57 = scmp.eq.s32.totalorder %s16, 0
      %p58 = por %p56, %p57
      %p59 = scmp.ne.s32.totalorder %s47, %s48
      %p60 = scmp.eq.s32.totalorder %s17, 1
      %p61 = por %p59, %p60
      %p63 = scmp.ne.s32.totalorder %s48, %s62
      %p64 = scmp.eq.s32.totalorder %s17, 0
      %p65 = por %p63, %p64
      %s66 = ssub.s32 %s11, %s18
      %p67 = scmp.eq.s32.totalorder %s66, 0
      %s69 = sadd.s32 %s68, 1
      %s70 = scalar_select %p67, %s68, %s69
      %p73 = pneg %p67
      %p74 = scmp.eq.s32.totalorder %s11, 1
      %p75 = por %p73, %p74
      %p76 = scmp.ne.s32.totalorder %s68, %s71
      %p77 = scmp.eq.s32.totalorder %s11, 0
      %p78 = por %p76, %p77
      %p79 = scmp.ne.s32.totalorder %s68, %s71
      %p80 = scmp.eq.s32.totalorder %s16, 1
      %p81 = por %p79, %p80
      %p82 = scmp.ne.s32.totalorder %s71, %s72
      %p83 = scmp.eq.s32.totalorder %s16, 0
      %p84 = por %p82, %p83
      %p85 = scmp.ne.s32.totalorder %s71, %s72
      %p86 = scmp.eq.s32.totalorder %s17, 1
      %p87 = por %p85, %p86
      %p89 = scmp.ne.s32.totalorder %s72, %s88
      %p90 = scmp.eq.s32.totalorder %s17, 0
      %p91 = por %p89, %p90
      %p92 = scmp.le.s32.totalorder 1, %s11
      %p93 = scmp.lt.s32.totalorder %s11, 3
      %p94 = pnand %p92, %p93
      %p95 = pneg %p94
      // Predicated region
      $region9: #{tpu_custom_call.1} parent=5 // pred_check
        _
      $region10: #{tpu_custom_call.1} parent=5 // pred_check_branch
        %97 = sbr.rel (%p94) target = $region12
      $region11: #{tpu_custom_call.1} parent=5 // pred_region
        %s98 = ssub.s32 %s11, 1
        // Predicated region
        $region13: #{tpu_custom_call.1} parent=11 // pred_check
          %p99 = pneg %p58
        $region14: #{tpu_custom_call.1} parent=11 // pred_check_branch
          %101 = sbr.rel (%p99) target = $region16
        $region15: #{tpu_custom_call.1} parent=11 // pred_region
          _
        $region16: #{tpu_custom_call.1} parent=11 // pred_fallthru
          _
      $region12: #{tpu_custom_call.1} parent=5 // pred_fallthru
        _
      %p102 = scmp.lt.s32.totalorder %s11, 2
      // Predicated region
      $region17: #{tpu_custom_call.1} parent=5 // pred_check
        %p103 = pneg %p102
      $region18: #{tpu_custom_call.1} parent=5 // pred_check_branch
        %105 = sbr.rel (%p103) target = $region20
      $region19: #{tpu_custom_call.1} parent=5 // pred_region
        // Predicated region
        $region21: #{tpu_custom_call.1} parent=19 // pred_check
          %p106 = pneg %p31
        $region22: #{tpu_custom_call.1} parent=19 // pred_check_branch
          %108 = sbr.rel (%p106) target = $region24
        $region23: #{tpu_custom_call.1} parent=19 // pred_region
          %s109 = smul.u32 32, %s11
          %p110 = scmp.lt.s32.totalorder %s109, 63
          %s111 = scalar_select %p110, %s109, 63
          %s112 = smul.addr %s111, 4
          %s113 = scalar_lea.vmem %s0, %s112
          %s114 = smul.u32 32, %s11
        $region24: #{tpu_custom_call.1} parent=19 // pred_fallthru
          _
      $region20: #{tpu_custom_call.1} parent=5 // pred_fallthru
        _
      %p115 = scmp.le.s32.totalorder 1, %s11
      %p116 = scmp.lt.s32.totalorder %s11, 3
      %p117 = pnand %p115, %p116
      %p118 = pneg %p117
      // Predicated region
      $region25: #{tpu_custom_call.1} parent=5 // pred_check
        _
      $region26: #{tpu_custom_call.1} parent=5 // pred_check_branch
        %120 = sbr.rel (%p117) target = $region28
      $region27: #{tpu_custom_call.1} parent=5 // pred_region
        %s121 = ssub.s32 %s11, 1
        %s122 = smul.u32 32, %s16
        %p123 = scmp.lt.s32.totalorder %s122, 63
        %s124 = scalar_select %p123, %s122, 63
        %s125 = smul.addr %s124, 4
        %s126 = scalar_lea.vmem %s0, %s125
        %p127 = pneg %p37
        %p128 = pneg %p34
        %p129 = pneg %p58
        %p130 = pneg %p55
        %p131 = pneg %p84
        %p132 = pneg %p81
        %s133 = sand.u32 %s71, 1
        %s134 = scalar_lea.sflag [#allocation3], %s133
        %s135 = sand.u32 %s71, 1
        %s136 = smul.addr %s135, 128
        %s137 = scalar_lea.vmem [#allocation2], %s136
        %s138 = smul.u32 32, %s16
        %p139 = scmp.lt.s32.totalorder %s138, 63
        %s140 = scalar_select %p139, %s138, 63
        %s141 = smul.addr %s140, 4
        %s142 = scalar_lea.vmem %s0, %s141
        %s143 = smul.u32 32, %s16
        %s144 = smul.u32 32, %s16
        %v146 = vld [vmem:[%s142] sm:$0xf]
        %v147 = vld [vmem:[%s142 + $0x4] sm:$0xf]
        %v148 = vld [vmem:[%s142 + $0x8] sm:$0xf]
        %v149 = vld [vmem:[%s142 + $0xc] sm:$0xf]
        %v150 = vld [vmem:[%s142 + $0x10] sm:$0xf]
        %v151 = vld [vmem:[%s142 + $0x14] sm:$0xf]
        %v152 = vld [vmem:[%s142 + $0x18] sm:$0xf]
        %v153 = vld [vmem:[%s142 + $0x1c] sm:$0xf]
        %v154 = vld [vmem:[%s142 + $0x20] sm:$0xf]
        %v155 = vld [vmem:[%s142 + $0x24] sm:$0xf]
        %v156 = vld [vmem:[%s142 + $0x28] sm:$0xf]
        %v157 = vld [vmem:[%s142 + $0x2c] sm:$0xf]
        %v158 = vld [vmem:[%s142 + $0x30] sm:$0xf]
        %v159 = vld [vmem:[%s142 + $0x34] sm:$0xf]
        %v160 = vld [vmem:[%s142 + $0x38] sm:$0xf]
        %v161 = vld [vmem:[%s142 + $0x3c] sm:$0xf]
        %v162 = vld [vmem:[%s142 + $0x40] sm:$0xf]
        %v163 = vld [vmem:[%s142 + $0x44] sm:$0xf]
        %v164 = vld [vmem:[%s142 + $0x48] sm:$0xf]
        %v165 = vld [vmem:[%s142 + $0x4c] sm:$0xf]
        %v166 = vld [vmem:[%s142 + $0x50] sm:$0xf]
        %v167 = vld [vmem:[%s142 + $0x54] sm:$0xf]
        %v168 = vld [vmem:[%s142 + $0x58] sm:$0xf]
        %v169 = vld [vmem:[%s142 + $0x5c] sm:$0xf]
        %v170 = vld [vmem:[%s142 + $0x60] sm:$0xf]
        %v171 = vld [vmem:[%s142 + $0x64] sm:$0xf]
        %v172 = vld [vmem:[%s142 + $0x68] sm:$0xf]
        %v173 = vld [vmem:[%s142 + $0x6c] sm:$0xf]
        %v174 = vld [vmem:[%s142 + $0x70] sm:$0xf]
        %v175 = vld [vmem:[%s142 + $0x74] sm:$0xf]
        %v176 = vld [vmem:[%s142 + $0x78] sm:$0xf]
        %v177 = vld [vmem:[%s142 + $0x7c] sm:$0xf]
        %v178 = vld [vmem:[%s1] sm:$0xff]
        %v179 = vld [vmem:[%s1 + $0x8] sm:$0xff]
        %v180 = vld [vmem:[%s1 + $0x10] sm:$0xff]
        %v181 = vld [vmem:[%s1 + $0x18] sm:$0xff]
        %v182 = vld [vmem:[%s1 + $0x20] sm:$0x33]
        %v215 = vunpack.c.l.b16 %v146
        %v216 = vunpack.c.l.b16 %v147
        %v217 = vunpack.c.l.b16 %v148
        %v218 = vunpack.c.l.b16 %v149
        %v219 = vunpack.c.l.b16 %v150
        %v220 = vunpack.c.l.b16 %v151
        %v221 = vunpack.c.l.b16 %v152
        %v222 = vunpack.c.l.b16 %v153
        %v223 = vunpack.c.l.b16 %v154
        %v224 = vunpack.c.l.b16 %v155
        %v225 = vunpack.c.l.b16 %v156
        %v226 = vunpack.c.l.b16 %v157
        %v227 = vunpack.c.l.b16 %v158
        %v228 = vunpack.c.l.b16 %v159
        %v229 = vunpack.c.l.b16 %v160
        %v230 = vunpack.c.l.b16 %v161
        %v231 = vunpack.c.l.b16 %v162
        %v232 = vunpack.c.l.b16 %v163
        %v233 = vunpack.c.l.b16 %v164
        %v234 = vunpack.c.l.b16 %v165
        %v235 = vunpack.c.l.b16 %v166
        %v236 = vunpack.c.l.b16 %v167
        %v237 = vunpack.c.l.b16 %v168
        %v238 = vunpack.c.l.b16 %v169
        %v239 = vunpack.c.l.b16 %v170
        %v240 = vunpack.c.l.b16 %v171
        %v241 = vunpack.c.l.b16 %v172
        %v242 = vunpack.c.l.b16 %v173
        %v243 = vunpack.c.l.b16 %v174
        %v244 = vunpack.c.l.b16 %v175
        %v245 = vunpack.c.l.b16 %v176
        %v246 = vunpack.c.l.b16 %v177
        %v247 = vpack.c.b16 %v216, %v215
        %v248 = vpack.c.b16 %v218, %v217
        %v249 = vpack.c.b16 %v220, %v219
        %v250 = vpack.c.b16 %v222, %v221
        %v251 = vpack.c.b16 %v224, %v223
        %v252 = vpack.c.b16 %v226, %v225
        %v253 = vpack.c.b16 %v228, %v227
        %v254 = vpack.c.b16 %v230, %v229
        %v255 = vpack.c.b16 %v232, %v231
        %v256 = vpack.c.b16 %v234, %v233
        %v257 = vpack.c.b16 %v236, %v235
        %v258 = vpack.c.b16 %v238, %v237
        %v259 = vpack.c.b16 %v240, %v239
        %v260 = vpack.c.b16 %v242, %v241
        %v261 = vpack.c.b16 %v244, %v243
        %v262 = vpack.c.b16 %v246, %v245
        %v268 = vunpack.c.l.b16 %v178
        %v269 = vunpack.c.h.b16 %v178
        %v270 = vunpack.c.l.b16 %v179
        %v271 = vunpack.c.h.b16 %v179
        %v272 = vunpack.c.l.b16 %v180
        %v273 = vunpack.c.h.b16 %v180
        %v274 = vunpack.c.l.b16 %v181
        %v275 = vunpack.c.h.b16 %v181
        %v276 = vunpack.c.l.b16 %v182
        %v277 = vunpack.c.h.b16 %v182
        %v278 = vpack.c.b16 %v270, %v268
        %v279 = vpack.c.b16 %v271, %v269
        %v280 = vpack.c.b16 %v274, %v272
        %v281 = vpack.c.b16 %v275, %v273
        %v282 = vpack.c.b16 %v276, %v276
        %v283 = vpack.c.b16 %v277, %v277
        %vm288 = vcmask 293888
        %v290 = vsel %vm288, %v247, 0
        %v293 = vsel %vm288, %v248, 0
        %v296 = vsel %vm288, %v249, 0
        %v299 = vsel %vm288, %v250, 0
        %v302 = vsel %vm288, %v251, 0
        %v305 = vsel %vm288, %v252, 0
        %v308 = vsel %vm288, %v253, 0
        %v311 = vsel %vm288, %v254, 0
        %v314 = vsel %vm288, %v255, 0
        %v317 = vsel %vm288, %v256, 0
        %v320 = vsel %vm288, %v257, 0
        %v323 = vsel %vm288, %v258, 0
        %v326 = vsel %vm288, %v259, 0
        %v329 = vsel %vm288, %v260, 0
        %v332 = vsel %vm288, %v261, 0
        %v335 = vsel %vm288, %v262, 0
        %vm337 = vcmask 1041408
        %v339 = vsel %vm337, %v282, 0
        %v342 = vsel %vm337, %v283, 0
        %344 = vmatprep.subr.bf16.mxu0 0
        %345 = vmatpush1.bf16.msra.mxu0 0
        %346 = vmatprep.subr.bf16.mxu0 0
        %347 = vmatpush1.bf16.msra.mxu0 0
        %348 = vmatprep.subr.bf16.mxu0 0
        %349 = vmatpush1.bf16.msra.mxu0 0
        %350 = vmatprep.subr.bf16.mxu0 0
        %351 = vmatpush1.bf16.msra.mxu0 0
        %352 = vmatprep.subr.bf16.mxu0 0
        %353 = vmatpush1.bf16.msra.mxu0 0
        %354 = vmatprep.subr.bf16.mxu0 %v342
        %355 = vmatpush1.bf16.msra.mxu0 %v339
        %356 = vmatprep.subr.bf16.mxu0 %v281
        %357 = vmatpush1.bf16.msra.mxu0 %v280
        %358 = vmatprep.subr.bf16.mxu0 %v279
        %359 = vmatpush1.bf16.msra.mxu0 %v278
        %360 = vmatprep.subr.bf16.mxu0 0
        %361 = vmatpush2.bf16.msra.mxu0 0
        %362 = vmatprep.subr.bf16.mxu0 0
        %363 = vmatpush2.bf16.msra.mxu0 0
        %364 = vmatprep.subr.bf16.mxu0 0
        %365 = vmatpush2.bf16.msra.mxu0 0
        %366 = vmatprep.subr.bf16.mxu0 0
        %367 = vmatpush2.bf16.msra.mxu0 0
        %368 = vmatprep.subr.bf16.mxu0 0
        %369 = vmatpush2.bf16.msra.mxu0 0
        %370 = vmatprep.subr.bf16.mxu0 0
        %371 = vmatpush2.bf16.msra.mxu0 0
        %372 = vmatprep.subr.bf16.mxu0 0
        %373 = vmatpush2.bf16.msra.mxu0 0
        %374 = vmatprep.subr.bf16.mxu0 0
        %375 = vmatpush2.bf16.msra.mxu0 0
        %376 = vmatprep.mubr.bf16.mxu0 0
        %377 = vmatmul.mubr.bf16.gmra.mxu0 %v290
        %v378 = vpop.f32.mrf.mxu0
        %v379 = vadd.f32 0.0, %v378
        %v380 = vpop.f32.mrf.mxu0
        %v381 = vadd.f32 0.0, %v380
        %v382 = vpop.f32.mrf.mxu0
        %v383 = vadd.f32 0.0, %v382
        %v384 = vpop.f32.mrf.mxu0
        %v385 = vadd.f32 0.0, %v384
        %386 = vmatprep.mubr.bf16.mxu0 0
        %387 = vmatmul.mubr.bf16.gmra.mxu0 %v293
        %v388 = vpop.f32.mrf.mxu0
        %v389 = vadd.f32 0.0, %v388
        %v390 = vpop.f32.mrf.mxu0
        %v391 = vadd.f32 0.0, %v390
        %v392 = vpop.f32.mrf.mxu0
        %v393 = vadd.f32 0.0, %v392
        %v394 = vpop.f32.mrf.mxu0
        %v395 = vadd.f32 0.0, %v394
        %396 = vmatprep.mubr.bf16.mxu0 0
        %397 = vmatmul.mubr.bf16.gmra.mxu0 %v296
        %v398 = vpop.f32.mrf.mxu0
        %v399 = vadd.f32 0.0, %v398
        %v400 = vpop.f32.mrf.mxu0
        %v401 = vadd.f32 0.0, %v400
        %v402 = vpop.f32.mrf.mxu0
        %v403 = vadd.f32 0.0, %v402
        %v404 = vpop.f32.mrf.mxu0
        %v405 = vadd.f32 0.0, %v404
        %406 = vmatprep.mubr.bf16.mxu0 0
        %407 = vmatmul.mubr.bf16.gmra.mxu0 %v299
        %v408 = vpop.f32.mrf.mxu0
        %v409 = vadd.f32 0.0, %v408
        %v410 = vpop.f32.mrf.mxu0
        %v411 = vadd.f32 0.0, %v410
        %v412 = vpop.f32.mrf.mxu0
        %v413 = vadd.f32 0.0, %v412
        %v414 = vpop.f32.mrf.mxu0
        %v415 = vadd.f32 0.0, %v414
        %416 = vmatprep.mubr.bf16.mxu0 0
        %417 = vmatmul.mubr.bf16.gmra.mxu0 %v302
        %v418 = vpop.f32.mrf.mxu0
        %v419 = vadd.f32 0.0, %v418
        %v420 = vpop.f32.mrf.mxu0
        %v421 = vadd.f32 0.0, %v420
        %v422 = vpop.f32.mrf.mxu0
        %v423 = vadd.f32 0.0, %v422
        %v424 = vpop.f32.mrf.mxu0
        %v425 = vadd.f32 0.0, %v424
        %426 = vmatprep.mubr.bf16.mxu0 0
        %427 = vmatmul.mubr.bf16.gmra.mxu0 %v305
        %v428 = vpop.f32.mrf.mxu0
        %v429 = vadd.f32 0.0, %v428
        %v430 = vpop.f32.mrf.mxu0
        %v431 = vadd.f32 0.0, %v430
        %v432 = vpop.f32.mrf.mxu0
        %v433 = vadd.f32 0.0, %v432
        %v434 = vpop.f32.mrf.mxu0
        %v435 = vadd.f32 0.0, %v434
        %436 = vmatprep.mubr.bf16.mxu0 0
        %437 = vmatmul.mubr.bf16.gmra.mxu0 %v308
        %v438 = vpop.f32.mrf.mxu0
        %v439 = vadd.f32 0.0, %v438
        %v440 = vpop.f32.mrf.mxu0
        %v441 = vadd.f32 0.0, %v440
        %v442 = vpop.f32.mrf.mxu0
        %v443 = vadd.f32 0.0, %v442
        %v444 = vpop.f32.mrf.mxu0
        %v445 = vadd.f32 0.0, %v444
        %446 = vmatprep.mubr.bf16.mxu0 0
        %447 = vmatmul.mubr.bf16.gmra.mxu0 %v311
        %v448 = vpop.f32.mrf.mxu0
        %v449 = vadd.f32 0.0, %v448
        %v450 = vpop.f32.mrf.mxu0
        %v451 = vadd.f32 0.0, %v450
        %v452 = vpop.f32.mrf.mxu0
        %v453 = vadd.f32 0.0, %v452
        %v454 = vpop.f32.mrf.mxu0
        %v455 = vadd.f32 0.0, %v454
        %456 = vmatprep.mubr.bf16.mxu0 0
        %457 = vmatmul.mubr.bf16.gmra.mxu0 %v314
        %v458 = vpop.f32.mrf.mxu0
        %v459 = vadd.f32 0.0, %v458
        %v460 = vpop.f32.mrf.mxu0
        %v461 = vadd.f32 0.0, %v460
        %v462 = vpop.f32.mrf.mxu0
        %v463 = vadd.f32 0.0, %v462
        %v464 = vpop.f32.mrf.mxu0
        %v465 = vadd.f32 0.0, %v464
        %466 = vmatprep.mubr.bf16.mxu0 0
        %467 = vmatmul.mubr.bf16.gmra.mxu0 %v317
        %v468 = vpop.f32.mrf.mxu0
        %v469 = vadd.f32 0.0, %v468
        %v470 = vpop.f32.mrf.mxu0
        %v471 = vadd.f32 0.0, %v470
        %v472 = vpop.f32.mrf.mxu0
        %v473 = vadd.f32 0.0, %v472
        %v474 = vpop.f32.mrf.mxu0
        %v475 = vadd.f32 0.0, %v474
        %476 = vmatprep.mubr.bf16.mxu0 0
        %477 = vmatmul.mubr.bf16.gmra.mxu0 %v320
        %v478 = vpop.f32.mrf.mxu0
        %v479 = vadd.f32 0.0, %v478
        %v480 = vpop.f32.mrf.mxu0
        %v481 = vadd.f32 0.0, %v480
        %v482 = vpop.f32.mrf.mxu0
        %v483 = vadd.f32 0.0, %v482
        %v484 = vpop.f32.mrf.mxu0
        %v485 = vadd.f32 0.0, %v484
        %486 = vmatprep.mubr.bf16.mxu0 0
        %487 = vmatmul.mubr.bf16.gmra.mxu0 %v323
        %v488 = vpop.f32.mrf.mxu0
        %v489 = vadd.f32 0.0, %v488
        %v490 = vpop.f32.mrf.mxu0
        %v491 = vadd.f32 0.0, %v490
        %v492 = vpop.f32.mrf.mxu0
        %v493 = vadd.f32 0.0, %v492
        %v494 = vpop.f32.mrf.mxu0
        %v495 = vadd.f32 0.0, %v494
        %496 = vmatprep.mubr.bf16.mxu0 0
        %497 = vmatmul.mubr.bf16.gmra.mxu0 %v326
        %v498 = vpop.f32.mrf.mxu0
        %v499 = vadd.f32 0.0, %v498
        %v500 = vpop.f32.mrf.mxu0
        %v501 = vadd.f32 0.0, %v500
        %v502 = vpop.f32.mrf.mxu0
        %v503 = vadd.f32 0.0, %v502
        %v504 = vpop.f32.mrf.mxu0
        %v505 = vadd.f32 0.0, %v504
        %506 = vmatprep.mubr.bf16.mxu0 0
        %507 = vmatmul.mubr.bf16.gmra.mxu0 %v329
        %v508 = vpop.f32.mrf.mxu0
        %v509 = vadd.f32 0.0, %v508
        %v510 = vpop.f32.mrf.mxu0
        %v511 = vadd.f32 0.0, %v510
        %v512 = vpop.f32.mrf.mxu0
        %v513 = vadd.f32 0.0, %v512
        %v514 = vpop.f32.mrf.mxu0
        %v515 = vadd.f32 0.0, %v514
        %516 = vmatprep.mubr.bf16.mxu0 0
        %517 = vmatmul.mubr.bf16.gmra.mxu0 %v332
        %v518 = vpop.f32.mrf.mxu0
        %v519 = vadd.f32 0.0, %v518
        %v520 = vpop.f32.mrf.mxu0
        %v521 = vadd.f32 0.0, %v520
        %v522 = vpop.f32.mrf.mxu0
        %v523 = vadd.f32 0.0, %v522
        %v524 = vpop.f32.mrf.mxu0
        %v525 = vadd.f32 0.0, %v524
        %526 = vmatprep.mubr.bf16.mxu0 0
        %527 = vmatmul.mubr.bf16.gmra.mxu0 %v335
        %v528 = vpop.f32.mrf.mxu0
        %v529 = vadd.f32 0.0, %v528
        %v530 = vpop.f32.mrf.mxu0
        %v531 = vadd.f32 0.0, %v530
        %v532 = vpop.f32.mrf.mxu0
        %v533 = vadd.f32 0.0, %v532
        %v534 = vpop.f32.mrf.mxu0
        %v535 = vadd.f32 0.0, %v534
        %536 = vdwg.mxu0
        %v537 = vadd.f32 %v379, 1.0
        %v538 = vadd.f32 %v383, 1.0
        %v539 = vadd.f32 %v389, 1.0
        %v540 = vadd.f32 %v393, 1.0
        %v541 = vadd.f32 %v399, 1.0
        %v542 = vadd.f32 %v403, 1.0
        %v543 = vadd.f32 %v409, 1.0
        %v544 = vadd.f32 %v413, 1.0
        %v545 = vadd.f32 %v419, 1.0
        %v546 = vadd.f32 %v423, 1.0
        %v547 = vadd.f32 %v429, 1.0
        %v548 = vadd.f32 %v433, 1.0
        %v549 = vadd.f32 %v439, 1.0
        %v550 = vadd.f32 %v443, 1.0
        %v551 = vadd.f32 %v449, 1.0
        %v552 = vadd.f32 %v453, 1.0
        %v553 = vadd.f32 %v459, 1.0
        %v554 = vadd.f32 %v463, 1.0
        %v555 = vadd.f32 %v469, 1.0
        %v556 = vadd.f32 %v473, 1.0
        %v557 = vadd.f32 %v479, 1.0
        %v558 = vadd.f32 %v483, 1.0
        %v559 = vadd.f32 %v489, 1.0
        %v560 = vadd.f32 %v493, 1.0
        %v561 = vadd.f32 %v499, 1.0
        %v562 = vadd.f32 %v503, 1.0
        %v563 = vadd.f32 %v509, 1.0
        %v564 = vadd.f32 %v513, 1.0
        %v565 = vadd.f32 %v519, 1.0
        %v566 = vadd.f32 %v523, 1.0
        %v567 = vadd.f32 %v529, 1.0
        %v568 = vadd.f32 %v533, 1.0
        %v569 = vmul.f32 %v537, 0.5
        %v570 = vmul.f32 %v538, 0.5
        %v571 = vmul.f32 %v539, 0.5
        %v572 = vmul.f32 %v540, 0.5
        %v573 = vmul.f32 %v541, 0.5
        %v574 = vmul.f32 %v542, 0.5
        %v575 = vmul.f32 %v543, 0.5
        %v576 = vmul.f32 %v544, 0.5
        %v577 = vmul.f32 %v545, 0.5
        %v578 = vmul.f32 %v546, 0.5
        %v579 = vmul.f32 %v547, 0.5
        %v580 = vmul.f32 %v548, 0.5
        %v581 = vmul.f32 %v549, 0.5
        %v582 = vmul.f32 %v550, 0.5
        %v583 = vmul.f32 %v551, 0.5
        %v584 = vmul.f32 %v552, 0.5
        %v585 = vmul.f32 %v553, 0.5
        %v586 = vmul.f32 %v554, 0.5
        %v587 = vmul.f32 %v555, 0.5
        %v588 = vmul.f32 %v556, 0.5
        %v589 = vmul.f32 %v557, 0.5
        %v590 = vmul.f32 %v558, 0.5
        %v591 = vmul.f32 %v559, 0.5
        %v592 = vmul.f32 %v560, 0.5
        %v593 = vmul.f32 %v561, 0.5
        %v594 = vmul.f32 %v562, 0.5
        %v595 = vmul.f32 %v563, 0.5
        %v596 = vmul.f32 %v564, 0.5
        %v597 = vmul.f32 %v565, 0.5
        %v598 = vmul.f32 %v566, 0.5
        %v599 = vmul.f32 %v567, 0.5
        %v600 = vmul.f32 %v568, 0.5
        %v601 = vadd.f32 %v381, 1.0
        %v602 = vadd.f32 %v385, 1.0
        %v603 = vadd.f32 %v391, 1.0
        %v604 = vadd.f32 %v395, 1.0
        %v605 = vadd.f32 %v401, 1.0
        %v606 = vadd.f32 %v405, 1.0
        %v607 = vadd.f32 %v411, 1.0
        %v608 = vadd.f32 %v415, 1.0
        %v609 = vadd.f32 %v421, 1.0
        %v610 = vadd.f32 %v425, 1.0
        %v611 = vadd.f32 %v431, 1.0
        %v612 = vadd.f32 %v435, 1.0
        %v613 = vadd.f32 %v441, 1.0
        %v614 = vadd.f32 %v445, 1.0
        %v615 = vadd.f32 %v451, 1.0
        %v616 = vadd.f32 %v455, 1.0
        %v617 = vadd.f32 %v461, 1.0
        %v618 = vadd.f32 %v465, 1.0
        %v619 = vadd.f32 %v471, 1.0
        %v620 = vadd.f32 %v475, 1.0
        %v621 = vadd.f32 %v481, 1.0
        %v622 = vadd.f32 %v485, 1.0
        %v623 = vadd.f32 %v491, 1.0
        %v624 = vadd.f32 %v495, 1.0
        %v625 = vadd.f32 %v501, 1.0
        %v626 = vadd.f32 %v505, 1.0
        %v627 = vadd.f32 %v511, 1.0
        %v628 = vadd.f32 %v515, 1.0
        %v629 = vadd.f32 %v521, 1.0
        %v630 = vadd.f32 %v525, 1.0
        %v631 = vadd.f32 %v531, 1.0
        %v632 = vadd.f32 %v535, 1.0
        %v633 = vmul.f32 %v569, %v601
        %v634 = vmul.f32 %v570, %v602
        %v635 = vmul.f32 %v571, %v603
        %v636 = vmul.f32 %v572, %v604
        %v637 = vmul.f32 %v573, %v605
        %v638 = vmul.f32 %v574, %v606
        %v639 = vmul.f32 %v575, %v607
        %v640 = vmul.f32 %v576, %v608
        %v641 = vmul.f32 %v577, %v609
        %v642 = vmul.f32 %v578, %v610
        %v643 = vmul.f32 %v579, %v611
        %v644 = vmul.f32 %v580, %v612
        %v645 = vmul.f32 %v581, %v613
        %v646 = vmul.f32 %v582, %v614
        %v647 = vmul.f32 %v583, %v615
        %v648 = vmul.f32 %v584, %v616
        %v649 = vmul.f32 %v585, %v617
        %v650 = vmul.f32 %v586, %v618
        %v651 = vmul.f32 %v587, %v619
        %v652 = vmul.f32 %v588, %v620
        %v653 = vmul.f32 %v589, %v621
        %v654 = vmul.f32 %v590, %v622
        %v655 = vmul.f32 %v591, %v623
        %v656 = vmul.f32 %v592, %v624
        %v657 = vmul.f32 %v593, %v625
        %v658 = vmul.f32 %v594, %v626
        %v659 = vmul.f32 %v595, %v627
        %v660 = vmul.f32 %v596, %v628
        %v661 = vmul.f32 %v597, %v629
        %v662 = vmul.f32 %v598, %v630
        %v663 = vmul.f32 %v599, %v631
        %v664 = vmul.f32 %v600, %v632
        %v665 = vsub.f32 1.0, %v633
        %v666 = vsub.f32 1.0, %v634
        %v667 = vsub.f32 1.0, %v635
        %v668 = vsub.f32 1.0, %v636
        %v669 = vsub.f32 1.0, %v637
        %v670 = vsub.f32 1.0, %v638
        %v671 = vsub.f32 1.0, %v639
        %v672 = vsub.f32 1.0, %v640
        %v673 = vsub.f32 1.0, %v641
        %v674 = vsub.f32 1.0, %v642
        %v675 = vsub.f32 1.0, %v643
        %v676 = vsub.f32 1.0, %v644
        %v677 = vsub.f32 1.0, %v645
        %v678 = vsub.f32 1.0, %v646
        %v679 = vsub.f32 1.0, %v647
        %v680 = vsub.f32 1.0, %v648
        %v681 = vsub.f32 1.0, %v649
        %v682 = vsub.f32 1.0, %v650
        %v683 = vsub.f32 1.0, %v651
        %v684 = vsub.f32 1.0, %v652
        %v685 = vsub.f32 1.0, %v653
        %v686 = vsub.f32 1.0, %v654
        %v687 = vsub.f32 1.0, %v655
        %v688 = vsub.f32 1.0, %v656
        %v689 = vsub.f32 1.0, %v657
        %v690 = vsub.f32 1.0, %v658
        %v691 = vsub.f32 1.0, %v659
        %v692 = vsub.f32 1.0, %v660
        %v693 = vsub.f32 1.0, %v661
        %v694 = vsub.f32 1.0, %v662
        %v695 = vsub.f32 1.0, %v663
        %v696 = vsub.f32 1.0, %v664
        %v697 = vpack.c.bf16 %v666, %v665
        %v698 = vpack.c.bf16 %v668, %v667
        %v699 = vpack.c.bf16 %v670, %v669
        %v700 = vpack.c.bf16 %v672, %v671
        %v701 = vpack.c.bf16 %v674, %v673
        %v702 = vpack.c.bf16 %v676, %v675
        %v703 = vpack.c.bf16 %v678, %v677
        %v704 = vpack.c.bf16 %v680, %v679
        %v705 = vpack.c.bf16 %v682, %v681
        %v706 = vpack.c.bf16 %v684, %v683
        %v707 = vpack.c.bf16 %v686, %v685
        %v708 = vpack.c.bf16 %v688, %v687
        %v709 = vpack.c.bf16 %v690, %v689
        %v710 = vpack.c.bf16 %v692, %v691
        %v711 = vpack.c.bf16 %v694, %v693
        %v712 = vpack.c.bf16 %v696, %v695
        %v729 = vunpack.c.l.b16 %v697
        %v730 = vunpack.c.h.b16 %v697
        %v731 = vunpack.c.l.b16 %v698
        %v732 = vunpack.c.h.b16 %v698
        %v733 = vunpack.c.l.b16 %v699
        %v734 = vunpack.c.h.b16 %v699
        %v735 = vunpack.c.l.b16 %v700
        %v736 = vunpack.c.h.b16 %v700
        %v737 = vunpack.c.l.b16 %v701
        %v738 = vunpack.c.h.b16 %v701
        %v739 = vunpack.c.l.b16 %v702
        %v740 = vunpack.c.h.b16 %v702
        %v741 = vunpack.c.l.b16 %v703
        %v742 = vunpack.c.h.b16 %v703
        %v743 = vunpack.c.l.b16 %v704
        %v744 = vunpack.c.h.b16 %v704
        %v745 = vunpack.c.l.b16 %v705
        %v746 = vunpack.c.h.b16 %v705
        %v747 = vunpack.c.l.b16 %v706
        %v748 = vunpack.c.h.b16 %v706
        %v749 = vunpack.c.l.b16 %v707
        %v750 = vunpack.c.h.b16 %v707
        %v751 = vunpack.c.l.b16 %v708
        %v752 = vunpack.c.h.b16 %v708
        %v753 = vunpack.c.l.b16 %v709
        %v754 = vunpack.c.h.b16 %v709
        %v755 = vunpack.c.l.b16 %v710
        %v756 = vunpack.c.h.b16 %v710
        %v757 = vunpack.c.l.b16 %v711
        %v758 = vunpack.c.h.b16 %v711
        %v759 = vunpack.c.l.b16 %v712
        %v760 = vunpack.c.h.b16 %v712
        %v761 = vpack.c.b16 %v729, %v729
        %v762 = vpack.c.b16 %v730, %v730
        %v763 = vpack.c.b16 %v731, %v731
        %v764 = vpack.c.b16 %v732, %v732
        %v765 = vpack.c.b16 %v733, %v733
        %v766 = vpack.c.b16 %v734, %v734
        %v767 = vpack.c.b16 %v735, %v735
        %v768 = vpack.c.b16 %v736, %v736
        %v769 = vpack.c.b16 %v737, %v737
        %v770 = vpack.c.b16 %v738, %v738
        %v771 = vpack.c.b16 %v739, %v739
        %v772 = vpack.c.b16 %v740, %v740
        %v773 = vpack.c.b16 %v741, %v741
        %v774 = vpack.c.b16 %v742, %v742
        %v775 = vpack.c.b16 %v743, %v743
        %v776 = vpack.c.b16 %v744, %v744
        %v777 = vpack.c.b16 %v745, %v745
        %v778 = vpack.c.b16 %v746, %v746
        %v779 = vpack.c.b16 %v747, %v747
        %v780 = vpack.c.b16 %v748, %v748
        %v781 = vpack.c.b16 %v749, %v749
        %v782 = vpack.c.b16 %v750, %v750
        %v783 = vpack.c.b16 %v751, %v751
        %v784 = vpack.c.b16 %v752, %v752
        %v785 = vpack.c.b16 %v753, %v753
        %v786 = vpack.c.b16 %v754, %v754
        %v787 = vpack.c.b16 %v755, %v755
        %v788 = vpack.c.b16 %v756, %v756
        %v789 = vpack.c.b16 %v757, %v757
        %v790 = vpack.c.b16 %v758, %v758
        %v791 = vpack.c.b16 %v759, %v759
        %v792 = vpack.c.b16 %v760, %v760
        %825 = vst [vmem:[%s137] sm:$0xf] %v761
        %826 = vst [vmem:[%s137 + $0x4] sm:$0xf] %v762
        %827 = vst [vmem:[%s137 + $0x8] sm:$0xf] %v763
        %828 = vst [vmem:[%s137 + $0xc] sm:$0xf] %v764
        %829 = vst [vmem:[%s137 + $0x10] sm:$0xf] %v765
        %830 = vst [vmem:[%s137 + $0x14] sm:$0xf] %v766
        %831 = vst [vmem:[%s137 + $0x18] sm:$0xf] %v767
        %832 = vst [vmem:[%s137 + $0x1c] sm:$0xf] %v768
        %833 = vst [vmem:[%s137 + $0x20] sm:$0xf] %v769
        %834 = vst [vmem:[%s137 + $0x24] sm:$0xf] %v770
        %835 = vst [vmem:[%s137 + $0x28] sm:$0xf] %v771
        %836 = vst [vmem:[%s137 + $0x2c] sm:$0xf] %v772
        %837 = vst [vmem:[%s137 + $0x30] sm:$0xf] %v773
        %838 = vst [vmem:[%s137 + $0x34] sm:$0xf] %v774
        %839 = vst [vmem:[%s137 + $0x38] sm:$0xf] %v775
        %840 = vst [vmem:[%s137 + $0x3c] sm:$0xf] %v776
        %841 = vst [vmem:[%s137 + $0x40] sm:$0xf] %v777
        %842 = vst [vmem:[%s137 + $0x44] sm:$0xf] %v778
        %843 = vst [vmem:[%s137 + $0x48] sm:$0xf] %v779
        %844 = vst [vmem:[%s137 + $0x4c] sm:$0xf] %v780
        %845 = vst [vmem:[%s137 + $0x50] sm:$0xf] %v781
        %846 = vst [vmem:[%s137 + $0x54] sm:$0xf] %v782
        %847 = vst [vmem:[%s137 + $0x58] sm:$0xf] %v783
        %848 = vst [vmem:[%s137 + $0x5c] sm:$0xf] %v784
        %849 = vst [vmem:[%s137 + $0x60] sm:$0xf] %v785
        %850 = vst [vmem:[%s137 + $0x64] sm:$0xf] %v786
        %851 = vst [vmem:[%s137 + $0x68] sm:$0xf] %v787
        %852 = vst [vmem:[%s137 + $0x6c] sm:$0xf] %v788
        %853 = vst [vmem:[%s137 + $0x70] sm:$0xf] %v789
        %854 = vst [vmem:[%s137 + $0x74] sm:$0xf] %v790
        %855 = vst [vmem:[%s137 + $0x78] sm:$0xf] %v791
        %856 = vst [vmem:[%s137 + $0x7c] sm:$0xf] %v792
        %s857 = sand.u32 %s71, 1
        %s858 = scalar_lea.sflag [#allocation3], %s857
        %s859 = sand.u32 %s71, 1
        %s860 = smul.addr %s859, 128
        %s861 = scalar_lea.vmem [#allocation2], %s860
        // Predicated region
        $region29: #{tpu_custom_call.1} parent=27 // pred_check
          %p862 = pneg %p81
        $region30: #{tpu_custom_call.1} parent=27 // pred_check_branch
          %864 = sbr.rel (%p862) target = $region32
        $region31: #{tpu_custom_call.1} parent=27 // pred_region
          %s865 = smul.u32 32, %s16
          %s867 = ssub.s32 2048, 2048
          %868 = vsyncadd %s858, %s867
          %s869 = smul.addr %s865, 64
          %s870 = scalar_lea.hbm %s2, %s869
          %s871 = sshll.u32 %s861, 4
          %s872 = int_to_ptr.vmem [resolvable:$true] %s871
          %877 = dma.vmem_to_hbm [thread:$0]  %s872, 2048, %s870, %s858, 64, 64, 4
        $region32: #{tpu_custom_call.1} parent=27 // pred_fallthru
          _
      $region28: #{tpu_custom_call.1} parent=5 // pred_fallthru
        _
      %p878 = scmp.le.s32.totalorder 2, %s11
      // Predicated region
      $region33: #{tpu_custom_call.1} parent=5 // pred_check
        %p879 = pneg %p878
      $region34: #{tpu_custom_call.1} parent=5 // pred_check_branch
        %881 = sbr.rel (%p879) target = $region36
      $region35: #{tpu_custom_call.1} parent=5 // pred_region
        %s882 = ssub.s32 %s11, 2
        // Predicated region
        $region37: #{tpu_custom_call.1} parent=35 // pred_check
          %p883 = pneg %p87
        $region38: #{tpu_custom_call.1} parent=35 // pred_check_branch
          %885 = sbr.rel (%p883) target = $region40
        $region39: #{tpu_custom_call.1} parent=35 // pred_region
          %s886 = sand.u32 %s72, 1
          %s887 = scalar_lea.sflag [#allocation3], %s886
          %s888 = sand.u32 %s72, 1
          %s889 = smul.addr %s888, 128
          %s890 = scalar_lea.vmem [#allocation2], %s889
          %891 = dma.done %s887, 2048
        $region40: #{tpu_custom_call.1} parent=35 // pred_fallthru
          _
      $region36: #{tpu_custom_call.1} parent=5 // pred_fallthru
        _
    $region6: #{tpu_custom_call.1} parent=1 // loop_footer
      %s15 = sadd.s32 1, %s11
    $region7: #{tpu_custom_call.1} parent=1 // loop_footer_branch
      %10 = sbr.rel target = $region3
    $region8: #{tpu_custom_call.1} parent=1 // loop_exit
      _
    %892 = vsyncpa [#allocation3], 1
    %s893 = scalar_lea.sflag [#allocation3], 1
    %894 = vsyncpa %s893, 1

</llo_original>
